<compile_context>
chip_gen: v7x
topology: tpu7x:2x2x1
jax: 0.10.0
libtpu: 0.0.40
codegen_flags: <defaults>
</compile_context>

<pallas_src>
import jax
import jax.numpy as jnp
from jax.experimental import pallas as pl
from jax.experimental.pallas import tpu as pltpu

EPS = 1e-5
IN_FEATURES = 32
HIDDEN = 128
OUT_FEATURES = 4
LANE = 128  # padded head width used only for the MXU-friendly w3 layout


# --------------------------------------------------------------------------- #
# Kernel
# --------------------------------------------------------------------------- #
def _dnn_kernel(x_ref, w1_ref, w2_ref, w3p_ref, rows_ref, o_ref):
    B = x_ref.shape[0]
    inv_b = jnp.float32(1.0 / B)

    rows = rows_ref[...]            # (8, 128) f32 packed small vectors
    g1, be1 = rows[0:1], rows[1:2]
    g2, be2 = rows[2:3], rows[3:4]
    b3 = rows[4:5]                  # zero beyond lane 3

    def bn_relu(h, g_row, be_row):
        # Two-pass batch stats on the VPU (sublane-tree sums); numerically safer
        # than E[h^2]-E[h]^2 and keeps the MXU drain off the critical path.
        mu = jnp.sum(h, axis=0, keepdims=True) * inv_b
        d = h - mu
        var = jnp.sum(d * d, axis=0, keepdims=True) * inv_b
        scale = g_row * jax.lax.rsqrt(var + EPS)     # EUP rsqrt
        return jnp.maximum(d * scale + be_row, 0.0)  # one FMA + one max / element

    # ---- block 1: Linear(32,128) [bias cancelled by train-mode BN] + BN + ReLU
    x_bf16 = x_ref[...].astype(jnp.bfloat16)         # in-kernel cast (VPU)
    h = jnp.dot(x_bf16, w1_ref[...], preferred_element_type=jnp.float32)
    h = bn_relu(h, g1, be1)

    # ---- block 2: Linear(128,128) [bias cancelled by train-mode BN] + BN + ReLU
    h = jnp.dot(h.astype(jnp.bfloat16), w2_ref[...],
                preferred_element_type=jnp.float32)
    h = bn_relu(h, g2, be2)

    # ---- head: Linear(128,4) via a lane-padded (128,128) weight; store only the
    # true 4 output columns (16 B/row of HBM writeback).
    out = jnp.dot(h.astype(jnp.bfloat16), w3p_ref[...],
                  preferred_element_type=jnp.float32) + b3
    o_ref[...] = out[:, :OUT_FEATURES]


# --------------------------------------------------------------------------- #
# Parameter prep (done once, outside the per-call forward path)
# --------------------------------------------------------------------------- #
def prepare_params(params):
    """One-time weight prep: bf16 casts, head padding, small-vector packing."""
    w1 = params["w1"].astype(jnp.bfloat16)                      # (32, 128)
    w2 = params["w2"].astype(jnp.bfloat16)                      # (128, 128)
    w3p = jnp.pad(params["w3"],
                  ((0, 0), (0, LANE - OUT_FEATURES))).astype(jnp.bfloat16)
    b3p = jnp.pad(params["b3"], ((0, 0), (0, LANE - OUT_FEATURES)))  # f32 (1,128)
    rows = jnp.concatenate(
        [params["g1"], params["be1"], params["g2"], params["be2"], b3p,
         jnp.zeros((3, LANE), jnp.float32)], axis=0)            # (8, 128)
    return {"w1": w1, "w2": w2, "w3p": w3p, "rows": rows}


def _vmem_budget():
    """Derive (max fused batch, vmem_limit_bytes) from the actual chip."""
    try:
        cap = int(pltpu.get_tpu_info().vmem_capacity_bytes)
    except Exception:  # pragma: no cover - conservative fallback (v7x per-TC)
        cap = 64 * 1024 * 1024
    vmem_limit = int(min(cap * 3 // 4, 100 * 1024 * 1024))
    # rough per-row working set: x f32 + bf16 copy, a few live (·,128) f32
    # activations, bf16 matmul operands, padded head result, (·,4) output tile
    bytes_per_row = (IN_FEATURES * (4 + 2)
                     + 4 * HIDDEN * 4
                     + 2 * HIDDEN * 2
                     + LANE * 4
                     + OUT_FEATURES * 4)
    weight_bytes = 2 * (IN_FEATURES * HIDDEN + 2 * HIDDEN * LANE) + 8 * LANE * 4
    max_batch = (vmem_limit - weight_bytes - (4 << 20)) // bytes_per_row
    return int(max_batch), vmem_limit


# --------------------------------------------------------------------------- #
# Forward wrapper
# --------------------------------------------------------------------------- #
def dnn_forward(x, prepped):
    """x: (B, 32) float32. prepped: dict from prepare_params()."""
    B = x.shape[0]
    if B < 2:
        # PyTorch BatchNorm1d in train mode rejects B == 1 (zero variance).
        raise ValueError("training-mode BatchNorm1d requires batch size >= 2")
    max_batch, vmem_limit = _vmem_budget()
    if B > max_batch:
        # TODO(synk): batch-tiled two-phase BN pipeline for larger batches.
        raise ValueError(f"fused single-block path caps B at {max_batch}")

    args = (x, prepped["w1"], prepped["w2"], prepped["w3p"], prepped["rows"])

    def full_spec(a):
        # every array is 2-D; whole array as a single block (grid has one point)
        return pl.BlockSpec(a.shape, lambda: (0, 0))

    # advisory cost estimate for XLA scheduling around the custom call
    flops = 2 * B * (IN_FEATURES * HIDDEN + HIDDEN * HIDDEN + HIDDEN * LANE)
    flops += 2 * 6 * B * HIDDEN                      # BN stats / normalize (VPU)
    bytes_accessed = int(sum(int(a.size) * a.dtype.itemsize for a in args)
                         + B * OUT_FEATURES * 4)

    out = pl.pallas_call(
        _dnn_kernel,
        out_shape=jax.ShapeDtypeStruct((B, OUT_FEATURES), jnp.float32),
        grid=(),
        in_specs=[full_spec(a) for a in args],
        out_specs=pl.BlockSpec((B, OUT_FEATURES), lambda: (0, 0)),
        compiler_params=pltpu.CompilerParams(vmem_limit_bytes=vmem_limit),
        cost_estimate=pl.CostEstimate(flops=flops,
                                      transcendentals=2 * HIDDEN,
                                      bytes_accessed=bytes_accessed),
    )(*args)
    return out


# --------------------------------------------------------------------------- #
# Init + references + test
# --------------------------------------------------------------------------- #
def init_params(key):
    """Deterministic init mimicking PyTorch nn.Linear default (uniform ±1/sqrt(fan_in)).

    b1/b2 are kept only for the faithful f32 reference; the kernel omits them
    because train-mode BatchNorm cancels a pre-BN bias exactly.
    """
    ks = jax.random.split(key, 6)

    def linear_init(kw, kb, fan_in, fan_out):
        bound = 1.0 / jnp.sqrt(float(fan_in))
        w = jax.random.uniform(kw, (fan_in, fan_out), jnp.float32, -bound, bound)
        b = jax.random.uniform(kb, (1, fan_out), jnp.float32, -bound, bound)
        return w, b

    w1, b1 = linear_init(ks[0], ks[1], IN_FEATURES, HIDDEN)
    w2, b2 = linear_init(ks[2], ks[3], HIDDEN, HIDDEN)
    w3, b3 = linear_init(ks[4], ks[5], HIDDEN, OUT_FEATURES)

    ones = jnp.ones((1, HIDDEN), jnp.float32)
    zeros = jnp.zeros((1, HIDDEN), jnp.float32)
    return {
        "w1": w1, "b1": b1, "g1": ones, "be1": zeros,
        "w2": w2, "b2": b2, "g2": ones, "be2": zeros,
        "w3": w3, "b3": b3,
    }


def _reference_f32(x, p):
    """Faithful float32 forward of the PyTorch module (train-mode BatchNorm)."""
    def block(h, w, b, g, be):
        h = h @ w + b
        mu = h.mean(0, keepdims=True)
        var = ((h - mu) ** 2).mean(0, keepdims=True)
        return jnp.maximum((h - mu) / jnp.sqrt(var + EPS) * g + be, 0.0)

    h = block(x, p["w1"], p["b1"], p["g1"], p["be1"])
    h = block(h, p["w2"], p["b2"], p["g2"], p["be2"])
    return h @ p["w3"] + p["b3"]


def _reference_matched(x, p):
    """Numerics-matched reference: bf16 matmuls + folded two-pass BN, no b1/b2."""
    def bn_relu(h, g, be):
        mu = h.mean(0, keepdims=True)
        d = h - mu
        var = (d * d).mean(0, keepdims=True)
        return jnp.maximum(d * (g * jax.lax.rsqrt(var + EPS)) + be, 0.0)

    h = jnp.dot(x.astype(jnp.bfloat16), p["w1"].astype(jnp.bfloat16),
                preferred_element_type=jnp.float32)
    h = bn_relu(h, p["g1"], p["be1"])
    h = jnp.dot(h.astype(jnp.bfloat16), p["w2"].astype(jnp.bfloat16),
                preferred_element_type=jnp.float32)
    h = bn_relu(h, p["g2"], p["be2"])
    return jnp.dot(h.astype(jnp.bfloat16), p["w3"].astype(jnp.bfloat16),
                   preferred_element_type=jnp.float32) + p["b3"]


if __name__ == "__main__":
    key = jax.random.PRNGKey(0)
    k_x, k_p = jax.random.split(key)

    B = 8
    x = jax.random.normal(k_x, (B, IN_FEATURES), jnp.float32)
    params = init_params(k_p)
    prepped = prepare_params(params)

    out = jax.block_until_ready(dnn_forward(x, prepped))
    assert out.shape == (B, OUT_FEATURES)

    # tight check vs a reference that mirrors the kernel numerics (bf16 matmuls)
    ref_matched = _reference_matched(x, params)
    assert jnp.allclose(out, ref_matched, atol=2e-3, rtol=2e-3), \
        "mismatch vs numerics-matched reference"

    # loose check vs the faithful f32 PyTorch-semantics forward (bf16 rounding)
    ref_f32 = _reference_f32(x, params)
    assert jnp.allclose(out, ref_f32, atol=5e-2, rtol=5e-2), \
        "mismatch vs f32 module reference"

    print("KERNEL_OK")
</pallas_src>

<mosaic_0001>
module attributes {stable_mosaic.version = 11 : i64} {
  func.func @_dnn_kernel(%arg0: memref<8x32xf32, #tpu.memory_space<vmem>>, %arg1: memref<32x128xbf16, #tpu.memory_space<vmem>>, %arg2: memref<128x128xbf16, #tpu.memory_space<vmem>>, %arg3: memref<128x128xbf16, #tpu.memory_space<vmem>>, %arg4: memref<8x128xf32, #tpu.memory_space<vmem>>, %arg5: memref<8x4xf32, #tpu.memory_space<vmem>>) attributes {dimension_semantics = [], scalar_prefetch = 0 : i64, scratch_operands = 0 : i64, tpu.core_type = #tpu.core_type<tc>} {
    %c0 = arith.constant 0 : index
    %c0_0 = arith.constant 0 : index
    %0 = vector.load %arg4[%c0, %c0_0] : memref<8x128xf32, #tpu.memory_space<vmem>>, vector<8x128xf32>
    %1 = vector.extract_strided_slice %0 {offsets = [0, 0], sizes = [1, 128], strides = [1, 1]} : vector<8x128xf32> to vector<1x128xf32>
    %2 = vector.extract_strided_slice %0 {offsets = [1, 0], sizes = [1, 128], strides = [1, 1]} : vector<8x128xf32> to vector<1x128xf32>
    %3 = vector.extract_strided_slice %0 {offsets = [2, 0], sizes = [1, 128], strides = [1, 1]} : vector<8x128xf32> to vector<1x128xf32>
    %4 = vector.extract_strided_slice %0 {offsets = [3, 0], sizes = [1, 128], strides = [1, 1]} : vector<8x128xf32> to vector<1x128xf32>
    %5 = vector.extract_strided_slice %0 {offsets = [4, 0], sizes = [1, 128], strides = [1, 1]} : vector<8x128xf32> to vector<1x128xf32>
    %c0_1 = arith.constant 0 : index
    %c0_2 = arith.constant 0 : index
    %6 = vector.load %arg0[%c0_1, %c0_2] : memref<8x32xf32, #tpu.memory_space<vmem>>, vector<8x32xf32>
    %7 = arith.truncf %6 : vector<8x32xf32> to vector<8x32xbf16>
    %c0_3 = arith.constant 0 : index
    %c0_4 = arith.constant 0 : index
    %8 = vector.load %arg1[%c0_3, %c0_4] : memref<32x128xbf16, #tpu.memory_space<vmem>>, vector<32x128xbf16>
    %cst = arith.constant dense<0.000000e+00> : vector<8x128xf32>
    %9 = tpu.matmul %7, %8, %cst {dimension_numbers = #tpu.dot_dimension_numbers<[1], [0], [0], [1], [0, 0, 1, 1], [], []>} : vector<8x32xbf16>, vector<32x128xbf16>, vector<8x128xf32> -> vector<8x128xf32>
    %cst_5 = arith.constant dense<0.000000e+00> : vector<128xf32>
    %10 = vector.multi_reduction <add>, %9, %cst_5 [0] : vector<8x128xf32> to vector<128xf32>
    %11 = vector.shape_cast %10 : vector<128xf32> to vector<1x128xf32>
    %cst_6 = arith.constant 1.250000e-01 : f32
    %12 = vector.broadcast %cst_6 : f32 to vector<1x128xf32>
    %13 = arith.mulf %11, %12 : vector<1x128xf32>
    %14 = vector.broadcast %13 : vector<1x128xf32> to vector<8x128xf32>
    %15 = arith.subf %9, %14 : vector<8x128xf32>
    %16 = arith.mulf %15, %15 : vector<8x128xf32>
    %cst_7 = arith.constant dense<0.000000e+00> : vector<128xf32>
    %17 = vector.multi_reduction <add>, %16, %cst_7 [0] : vector<8x128xf32> to vector<128xf32>
    %18 = vector.shape_cast %17 : vector<128xf32> to vector<1x128xf32>
    %cst_8 = arith.constant 1.250000e-01 : f32
    %19 = vector.broadcast %cst_8 : f32 to vector<1x128xf32>
    %20 = arith.mulf %18, %19 : vector<1x128xf32>
    %cst_9 = arith.constant 9.99999974E-6 : f32
    %21 = vector.broadcast %cst_9 : f32 to vector<1x128xf32>
    %22 = arith.addf %20, %21 : vector<1x128xf32>
    %23 = math.rsqrt %22 : vector<1x128xf32>
    %24 = arith.mulf %1, %23 : vector<1x128xf32>
    %25 = vector.broadcast %24 : vector<1x128xf32> to vector<8x128xf32>
    %26 = arith.mulf %15, %25 : vector<8x128xf32>
    %27 = vector.broadcast %2 : vector<1x128xf32> to vector<8x128xf32>
    %28 = arith.addf %26, %27 : vector<8x128xf32>
    %cst_10 = arith.constant 0.000000e+00 : f32
    %29 = vector.broadcast %cst_10 : f32 to vector<8x128xf32>
    %30 = arith.maximumf %28, %29 : vector<8x128xf32>
    %31 = arith.truncf %30 : vector<8x128xf32> to vector<8x128xbf16>
    %c0_11 = arith.constant 0 : index
    %c0_12 = arith.constant 0 : index
    %32 = vector.load %arg2[%c0_11, %c0_12] : memref<128x128xbf16, #tpu.memory_space<vmem>>, vector<128x128xbf16>
    %cst_13 = arith.constant dense<0.000000e+00> : vector<8x128xf32>
    %33 = tpu.matmul %31, %32, %cst_13 {dimension_numbers = #tpu.dot_dimension_numbers<[1], [0], [0], [1], [0, 0, 1, 1], [], []>} : vector<8x128xbf16>, vector<128x128xbf16>, vector<8x128xf32> -> vector<8x128xf32>
    %cst_14 = arith.constant dense<0.000000e+00> : vector<128xf32>
    %34 = vector.multi_reduction <add>, %33, %cst_14 [0] : vector<8x128xf32> to vector<128xf32>
    %35 = vector.shape_cast %34 : vector<128xf32> to vector<1x128xf32>
    %cst_15 = arith.constant 1.250000e-01 : f32
    %36 = vector.broadcast %cst_15 : f32 to vector<1x128xf32>
    %37 = arith.mulf %35, %36 : vector<1x128xf32>
    %38 = vector.broadcast %37 : vector<1x128xf32> to vector<8x128xf32>
    %39 = arith.subf %33, %38 : vector<8x128xf32>
    %40 = arith.mulf %39, %39 : vector<8x128xf32>
    %cst_16 = arith.constant dense<0.000000e+00> : vector<128xf32>
    %41 = vector.multi_reduction <add>, %40, %cst_16 [0] : vector<8x128xf32> to vector<128xf32>
    %42 = vector.shape_cast %41 : vector<128xf32> to vector<1x128xf32>
    %cst_17 = arith.constant 1.250000e-01 : f32
    %43 = vector.broadcast %cst_17 : f32 to vector<1x128xf32>
    %44 = arith.mulf %42, %43 : vector<1x128xf32>
    %cst_18 = arith.constant 9.99999974E-6 : f32
    %45 = vector.broadcast %cst_18 : f32 to vector<1x128xf32>
    %46 = arith.addf %44, %45 : vector<1x128xf32>
    %47 = math.rsqrt %46 : vector<1x128xf32>
    %48 = arith.mulf %3, %47 : vector<1x128xf32>
    %49 = vector.broadcast %48 : vector<1x128xf32> to vector<8x128xf32>
    %50 = arith.mulf %39, %49 : vector<8x128xf32>
    %51 = vector.broadcast %4 : vector<1x128xf32> to vector<8x128xf32>
    %52 = arith.addf %50, %51 : vector<8x128xf32>
    %cst_19 = arith.constant 0.000000e+00 : f32
    %53 = vector.broadcast %cst_19 : f32 to vector<8x128xf32>
    %54 = arith.maximumf %52, %53 : vector<8x128xf32>
    %55 = arith.truncf %54 : vector<8x128xf32> to vector<8x128xbf16>
    %c0_20 = arith.constant 0 : index
    %c0_21 = arith.constant 0 : index
    %56 = vector.load %arg3[%c0_20, %c0_21] : memref<128x128xbf16, #tpu.memory_space<vmem>>, vector<128x128xbf16>
    %cst_22 = arith.constant dense<0.000000e+00> : vector<8x128xf32>
    %57 = tpu.matmul %55, %56, %cst_22 {dimension_numbers = #tpu.dot_dimension_numbers<[1], [0], [0], [1], [0, 0, 1, 1], [], []>} : vector<8x128xbf16>, vector<128x128xbf16>, vector<8x128xf32> -> vector<8x128xf32>
    %58 = vector.broadcast %5 : vector<1x128xf32> to vector<8x128xf32>
    %59 = arith.addf %57, %58 : vector<8x128xf32>
    %60 = vector.extract_strided_slice %59 {offsets = [0, 0], sizes = [8, 4], strides = [1, 1]} : vector<8x128xf32> to vector<8x4xf32>
    %c0_23 = arith.constant 0 : index
    %c0_24 = arith.constant 0 : index
    %61 = vector.load %arg5[%c0_23, %c0_24] : memref<8x4xf32, #tpu.memory_space<vmem>>, vector<8x4xf32>
    tpu.vector_store %arg5[%c0_23, %c0_24], %60 {strides = array<i32>} : memref<8x4xf32, #tpu.memory_space<vmem>>, vector<8x4xf32>,
    return
  }
}

</mosaic_0001>

<llo_original>
// kernel: tpu_custom_call.1
$region0: #{tpu_custom_call.1}
  #allocation0 [shape = 'u32[]', space=smem, size = 0x4, offset = 0x4, fixed_abs, tag = 'smem constant byte address 0x4 - core index']
  #allocation1 [shape = 'u32[144,128]{1,0:T(1,128)}', space=vmem, size = 0x12000, scoped, tag = 'internal scratch']
  %s0 = inlined_call_operand.hbm [shape: f32[8,32], index: 0, kind: input, shape index: {}]
  %s1 = inlined_call_operand.hbm [shape: bf16[32,128], index: 1, kind: input, shape index: {}]
  %s2 = inlined_call_operand.hbm [shape: bf16[128,128], index: 2, kind: input, shape index: {}]
  %s3 = inlined_call_operand.hbm [shape: bf16[128,128], index: 3, kind: input, shape index: {}]
  %s4 = inlined_call_operand.vmem [shape: f32[8,128], index: 4, kind: input, shape index: {}]
  %s5 = inlined_call_operand.vmem [shape: f32[8,4], index: 5, kind: output, shape index: {}]
  %s6 = sld [smem:[#allocation0]]
  $region46: #{tpu_custom_call.1} parent=0
    _
  %s8 = ssub.s32 1, %s6
  %s9 = scalar_select 0, %s8, %s6
  $region1: #{tpu_custom_call.1} parent=0
    #allocation2 [shape = 'u8[4096]{0}', space=vmem, size = 0x1000, scoped, tag = 'input window, operand 0, single buffered']
    #allocation3 [shape = 's32[1]{0}', space=sflag, size = 0x4, scoped, tag = 'scoped memory for tpu_custom_call.1']
    #allocation4 [shape = 'u8[8192]{0}', space=vmem, size = 0x2000, scoped, tag = 'input window, operand 1, single buffered']
    #allocation5 [shape = 's32[1]{0}', space=sflag, size = 0x4, scoped, tag = 'scoped memory for tpu_custom_call.1']
    #allocation6 [shape = 'u8[32768]{0}', space=vmem, size = 0x8000, scoped, tag = 'input window, operand 2, single buffered']
    #allocation7 [shape = 'u8[32768]{0}', space=vmem, size = 0x8000, scoped, tag = 'input window, operand 3, single buffered']
    #allocation8 [shape = 's32[1]{0}', space=sflag, size = 0x4, scoped, tag = 'scoped memory for tpu_custom_call.1']
    %10 = vsyncpa [#allocation3], 0
    %11 = vsyncpa [#allocation5], 0
    %12 = vsyncpa [#allocation8], 0
    // Predicated region
    $region2: #{tpu_custom_call.1} parent=1 // pred_check
      _
    $region3: #{tpu_custom_call.1} parent=1 // pred_check_branch
      %14 = sbr.rel (0) target = $region5
    $region4: #{tpu_custom_call.1} parent=1 // pred_region
      %s16 = ssub.s32 128, 128
      %17 = vsyncadd [#allocation3], %s16
      %s19 = sshll.u32 [#allocation2], 4
      %s20 = int_to_ptr.vmem [resolvable:$true] %s19
      %22 = dma.hbm_to_vmem [thread:$0]  %s0, 128, %s20, [#allocation3]
    $region5: #{tpu_custom_call.1} parent=1 // pred_fallthru
      _
    // Predicated region
    $region6: #{tpu_custom_call.1} parent=1 // pred_check
      _
    $region7: #{tpu_custom_call.1} parent=1 // pred_check_branch
      %24 = sbr.rel (0) target = $region9
    $region8: #{tpu_custom_call.1} parent=1 // pred_region
      %s26 = ssub.s32 256, 256
      %27 = vsyncadd [#allocation5], %s26
      %s28 = sshll.u32 [#allocation4], 4
      %s29 = int_to_ptr.vmem [resolvable:$true] %s28
      %34 = dma.hbm_to_vmem [thread:$0]  %s1, 256, %s29, [#allocation5], 64, 64, 4
    $region9: #{tpu_custom_call.1} parent=1 // pred_fallthru
      _
    // Predicated region
    $region10: #{tpu_custom_call.1} parent=1 // pred_check
      _
    $region11: #{tpu_custom_call.1} parent=1 // pred_check_branch
      %36 = sbr.rel (0) target = $region13
    $region12: #{tpu_custom_call.1} parent=1 // pred_region
      %s38 = ssub.s32 1024, 1024
      %39 = vsyncadd [#allocation5], %s38
      %s40 = sshll.u32 [#allocation6], 4
      %s41 = int_to_ptr.vmem [resolvable:$true] %s40
      %46 = dma.hbm_to_vmem [thread:$0]  %s2, 1024, %s41, [#allocation5], 64, 64, 4
    $region13: #{tpu_custom_call.1} parent=1 // pred_fallthru
      _
    // Predicated region
    $region14: #{tpu_custom_call.1} parent=1 // pred_check
      _
    $region15: #{tpu_custom_call.1} parent=1 // pred_check_branch
      %48 = sbr.rel (0) target = $region17
    $region16: #{tpu_custom_call.1} parent=1 // pred_region
      %s50 = ssub.s32 1024, 1024
      %51 = vsyncadd [#allocation8], %s50
      %s52 = sshll.u32 [#allocation7], 4
      %s53 = int_to_ptr.vmem [resolvable:$true] %s52
      %58 = dma.hbm_to_vmem [thread:$0]  %s3, 1024, %s53, [#allocation8], 64, 64, 4
    $region17: #{tpu_custom_call.1} parent=1 // pred_fallthru
      _
    // Predicated region
    $region18: #{tpu_custom_call.1} parent=1 // pred_check
      _
    $region19: #{tpu_custom_call.1} parent=1 // pred_check_branch
      %60 = sbr.rel (0) target = $region21
    $region20: #{tpu_custom_call.1} parent=1 // pred_region
      _
    $region21: #{tpu_custom_call.1} parent=1 // pred_fallthru
      _
    // Predicated region
    $region22: #{tpu_custom_call.1} parent=1 // pred_check
      _
    $region23: #{tpu_custom_call.1} parent=1 // pred_check_branch
      %62 = sbr.rel (0) target = $region25
    $region24: #{tpu_custom_call.1} parent=1 // pred_region
      %63 = dma.done [#allocation3], 128
    $region25: #{tpu_custom_call.1} parent=1 // pred_fallthru
      _
    // Predicated region
    $region26: #{tpu_custom_call.1} parent=1 // pred_check
      _
    $region27: #{tpu_custom_call.1} parent=1 // pred_check_branch
      %65 = sbr.rel (0) target = $region29
    $region28: #{tpu_custom_call.1} parent=1 // pred_region
      %66 = dma.done [#allocation5], 256
    $region29: #{tpu_custom_call.1} parent=1 // pred_fallthru
      _
    // Predicated region
    $region30: #{tpu_custom_call.1} parent=1 // pred_check
      _
    $region31: #{tpu_custom_call.1} parent=1 // pred_check_branch
      %68 = sbr.rel (0) target = $region33
    $region32: #{tpu_custom_call.1} parent=1 // pred_region
      %69 = dma.done [#allocation5], 1024
    $region33: #{tpu_custom_call.1} parent=1 // pred_fallthru
      _
    // Predicated region
    $region34: #{tpu_custom_call.1} parent=1 // pred_check
      _
    $region35: #{tpu_custom_call.1} parent=1 // pred_check_branch
      %71 = sbr.rel (0) target = $region37
    $region36: #{tpu_custom_call.1} parent=1 // pred_region
      %72 = dma.done [#allocation8], 1024
    $region37: #{tpu_custom_call.1} parent=1 // pred_fallthru
      _
    %v74 = vld [vmem:[%s4] sm:$0xff]
    %v75 = vld [vmem:[#allocation2] sm:$0xff]
    %v76 = vpack.c.bf16 %v75, %v75
    %v77 = vld [vmem:[#allocation4] sm:$0xf]
    %v78 = vld [vmem:[#allocation4 + $0x4] sm:$0xf]
    %v79 = vld [vmem:[#allocation4 + $0x8] sm:$0xf]
    %v80 = vld [vmem:[#allocation4 + $0xc] sm:$0xf]
    %v85 = vunpack.c.l.b16 %v77
    %v86 = vunpack.c.l.b16 %v78
    %v87 = vunpack.c.l.b16 %v79
    %v88 = vunpack.c.l.b16 %v80
    %v89 = vpack.c.b16 %v86, %v85
    %v90 = vpack.c.b16 %v88, %v87
    %vm93 = vcmask 261120
    %v95 = vsel %vm93, %v76, 0
    %97 = vmatprep.subr.bf16.mxu0 0
    %98 = vmatpush1.bf16.msra.mxu0 %v89
    %99 = vmatprep.subr.bf16.mxu0 0
    %100 = vmatpush1.bf16.msra.mxu0 %v90
    %101 = vmatprep.subr.bf16.mxu0 0
    %102 = vmatpush1.bf16.msra.mxu0 0
    %103 = vmatprep.subr.bf16.mxu0 0
    %104 = vmatpush1.bf16.msra.mxu0 0
    %105 = vmatprep.subr.bf16.mxu0 0
    %106 = vmatpush1.bf16.msra.mxu0 0
    %107 = vmatprep.subr.bf16.mxu0 0
    %108 = vmatpush1.bf16.msra.mxu0 0
    %109 = vmatprep.subr.bf16.mxu0 0
    %110 = vmatpush1.bf16.msra.mxu0 0
    %111 = vmatprep.subr.bf16.mxu0 0
    %112 = vmatpush1.bf16.msra.mxu0 0
    %113 = vmatprep.subr.bf16.mxu0 0
    %114 = vmatpush1.bf16.msra.mxu0 0
    %115 = vmatprep.subr.bf16.mxu0 0
    %116 = vmatpush1.bf16.msra.mxu0 0
    %117 = vmatprep.subr.bf16.mxu0 0
    %118 = vmatpush1.bf16.msra.mxu0 0
    %119 = vmatprep.subr.bf16.mxu0 0
    %120 = vmatpush1.bf16.msra.mxu0 0
    %121 = vmatprep.subr.bf16.mxu0 0
    %122 = vmatpush1.bf16.msra.mxu0 0
    %123 = vmatprep.subr.bf16.mxu0 0
    %124 = vmatpush1.bf16.msra.mxu0 0
    %125 = vmatprep.subr.bf16.mxu0 0
    %126 = vmatpush1.bf16.msra.mxu0 0
    %127 = vmatprep.subr.bf16.mxu0 0
    %128 = vmatpush1.bf16.msra.mxu0 0
    %129 = vmatprep.mubr.bf16.mxu0 0
    %130 = vmatmul.mubr.bf16.gmra.mrb[0].mxu0 %v95
    %v131 = vpop.f32.mrb[0].mxu0
    %v132 = vadd.f32 0.0, %v131
    %v133 = vpop.f32.mrb[0].mxu0
    %v134 = vpop.f32.mrb[0].mxu0
    %v135 = vpop.f32.mrb[0].mxu0
    %136 = vdwg.mxu0
    %v137 = vrot.slane %v132, 4
    %v138 = vadd.f32 %v132, %v137
    %v139 = vrot.slane %v138, 2
    %v140 = vadd.f32 %v138, %v139
    %v141 = vrot.slane %v140, 1
    %v142 = vadd.f32 %v140, %v141
    %v143 = vmul.f32 %v142, 0.125
    %v144 = vsub.f32 %v132, %v143
    %v145 = vmul.f32 %v144, %v144
    %v146 = vrot.slane %v145, 4
    %v147 = vadd.f32 %v145, %v146
    %v148 = vrot.slane %v147, 2
    %v149 = vadd.f32 %v147, %v148
    %v150 = vrot.slane %v149, 1
    %v151 = vadd.f32 %v149, %v150
    %v152 = vmul.f32 %v151, 0.125
    %v153 = vadd.f32 %v152, 1e-05
    %v154 = vrsqrt.pop %v153
    %v155 = vmul.f32 %v74, %v154
    %v156 = vlaneseq
    %v157 = vshrl.u32 %v156, 7
    %v158 = vsub.s32 0, %v157
    %v159 = vrot.slane %v155, %v158
    %v160 = vmul.f32 %v144, %v159
    %v161 = vlaneseq
    %v162 = vshrl.u32 %v161, 7
    %v163 = vsub.s32 1, %v162
    %v164 = vrot.slane %v74, %v163
    %v165 = vadd.f32 %v160, %v164
    %v166 = vmax.f32 %v165, 0.0
    %v167 = vpack.c.bf16 %v166, %v166
    %v168 = vld [vmem:[#allocation6] sm:$0xf]
    %v169 = vld [vmem:[#allocation6 + $0x4] sm:$0xf]
    %v170 = vld [vmem:[#allocation6 + $0x8] sm:$0xf]
    %v171 = vld [vmem:[#allocation6 + $0xc] sm:$0xf]
    %v172 = vld [vmem:[#allocation6 + $0x10] sm:$0xf]
    %v173 = vld [vmem:[#allocation6 + $0x14] sm:$0xf]
    %v174 = vld [vmem:[#allocation6 + $0x18] sm:$0xf]
    %v175 = vld [vmem:[#allocation6 + $0x1c] sm:$0xf]
    %v176 = vld [vmem:[#allocation6 + $0x20] sm:$0xf]
    %v177 = vld [vmem:[#allocation6 + $0x24] sm:$0xf]
    %v178 = vld [vmem:[#allocation6 + $0x28] sm:$0xf]
    %v179 = vld [vmem:[#allocation6 + $0x2c] sm:$0xf]
    %v180 = vld [vmem:[#allocation6 + $0x30] sm:$0xf]
    %v181 = vld [vmem:[#allocation6 + $0x34] sm:$0xf]
    %v182 = vld [vmem:[#allocation6 + $0x38] sm:$0xf]
    %v183 = vld [vmem:[#allocation6 + $0x3c] sm:$0xf]
    %v200 = vunpack.c.l.b16 %v168
    %v201 = vunpack.c.l.b16 %v169
    %v202 = vunpack.c.l.b16 %v170
    %v203 = vunpack.c.l.b16 %v171
    %v204 = vunpack.c.l.b16 %v172
    %v205 = vunpack.c.l.b16 %v173
    %v206 = vunpack.c.l.b16 %v174
    %v207 = vunpack.c.l.b16 %v175
    %v208 = vunpack.c.l.b16 %v176
    %v209 = vunpack.c.l.b16 %v177
    %v210 = vunpack.c.l.b16 %v178
    %v211 = vunpack.c.l.b16 %v179
    %v212 = vunpack.c.l.b16 %v180
    %v213 = vunpack.c.l.b16 %v181
    %v214 = vunpack.c.l.b16 %v182
    %v215 = vunpack.c.l.b16 %v183
    %v216 = vpack.c.b16 %v201, %v200
    %v217 = vpack.c.b16 %v203, %v202
    %v218 = vpack.c.b16 %v205, %v204
    %v219 = vpack.c.b16 %v207, %v206
    %v220 = vpack.c.b16 %v209, %v208
    %v221 = vpack.c.b16 %v211, %v210
    %v222 = vpack.c.b16 %v213, %v212
    %v223 = vpack.c.b16 %v215, %v214
    %232 = vmatprep.subr.bf16.mxu0 0
    %233 = vmatpush1.bf16.msra.mxu0 %v216
    %234 = vmatprep.subr.bf16.mxu0 0
    %235 = vmatpush1.bf16.msra.mxu0 %v217
    %236 = vmatprep.subr.bf16.mxu0 0
    %237 = vmatpush1.bf16.msra.mxu0 %v218
    %238 = vmatprep.subr.bf16.mxu0 0
    %239 = vmatpush1.bf16.msra.mxu0 %v219
    %240 = vmatprep.subr.bf16.mxu0 0
    %241 = vmatpush1.bf16.msra.mxu0 %v220
    %242 = vmatprep.subr.bf16.mxu0 0
    %243 = vmatpush1.bf16.msra.mxu0 %v221
    %244 = vmatprep.subr.bf16.mxu0 0
    %245 = vmatpush1.bf16.msra.mxu0 %v222
    %246 = vmatprep.subr.bf16.mxu0 0
    %247 = vmatpush1.bf16.msra.mxu0 %v223
    %248 = vmatprep.subr.bf16.mxu0 0
    %249 = vmatpush1.bf16.msra.mxu0 0
    %250 = vmatprep.subr.bf16.mxu0 0
    %251 = vmatpush1.bf16.msra.mxu0 0
    %252 = vmatprep.subr.bf16.mxu0 0
    %253 = vmatpush1.bf16.msra.mxu0 0
    %254 = vmatprep.subr.bf16.mxu0 0
    %255 = vmatpush1.bf16.msra.mxu0 0
    %256 = vmatprep.subr.bf16.mxu0 0
    %257 = vmatpush1.bf16.msra.mxu0 0
    %258 = vmatprep.subr.bf16.mxu0 0
    %259 = vmatpush1.bf16.msra.mxu0 0
    %260 = vmatprep.subr.bf16.mxu0 0
    %261 = vmatpush1.bf16.msra.mxu0 0
    %262 = vmatprep.subr.bf16.mxu0 0
    %263 = vmatpush1.bf16.msra.mxu0 0
    %264 = vmatprep.mubr.bf16.mxu0 0
    %265 = vmatmul.mubr.bf16.gmra.mrb[0].mxu0 %v167
    %v266 = vpop.f32.mrb[0].mxu0
    %v267 = vadd.f32 0.0, %v266
    %v268 = vpop.f32.mrb[0].mxu0
    %v269 = vpop.f32.mrb[0].mxu0
    %v270 = vpop.f32.mrb[0].mxu0
    %271 = vdwg.mxu0
    %v272 = vrot.slane %v267, 4
    %v273 = vadd.f32 %v267, %v272
    %v274 = vrot.slane %v273, 2
    %v275 = vadd.f32 %v273, %v274
    %v276 = vrot.slane %v275, 1
    %v277 = vadd.f32 %v275, %v276
    %v278 = vmul.f32 %v277, 0.125
    %v279 = vsub.f32 %v267, %v278
    %v280 = vmul.f32 %v279, %v279
    %v281 = vrot.slane %v280, 4
    %v282 = vadd.f32 %v280, %v281
    %v283 = vrot.slane %v282, 2
    %v284 = vadd.f32 %v282, %v283
    %v285 = vrot.slane %v284, 1
    %v286 = vadd.f32 %v284, %v285
    %v287 = vmul.f32 %v286, 0.125
    %v288 = vadd.f32 %v287, 1e-05
    %v289 = vrsqrt.pop %v288
    %v290 = vmul.f32 %v74, %v289
    %v291 = vlaneseq
    %v292 = vshrl.u32 %v291, 7
    %v293 = vsub.s32 2, %v292
    %v294 = vrot.slane %v290, %v293
    %v295 = vmul.f32 %v279, %v294
    %v296 = vlaneseq
    %v297 = vshrl.u32 %v296, 7
    %v298 = vsub.s32 3, %v297
    %v299 = vrot.slane %v74, %v298
    %v300 = vadd.f32 %v295, %v299
    %v301 = vmax.f32 %v300, 0.0
    %v302 = vpack.c.bf16 %v301, %v301
    %v303 = vld [vmem:[#allocation7] sm:$0xf]
    %v304 = vld [vmem:[#allocation7 + $0x4] sm:$0xf]
    %v305 = vld [vmem:[#allocation7 + $0x8] sm:$0xf]
    %v306 = vld [vmem:[#allocation7 + $0xc] sm:$0xf]
    %v307 = vld [vmem:[#allocation7 + $0x10] sm:$0xf]
    %v308 = vld [vmem:[#allocation7 + $0x14] sm:$0xf]
    %v309 = vld [vmem:[#allocation7 + $0x18] sm:$0xf]
    %v310 = vld [vmem:[#allocation7 + $0x1c] sm:$0xf]
    %v311 = vld [vmem:[#allocation7 + $0x20] sm:$0xf]
    %v312 = vld [vmem:[#allocation7 + $0x24] sm:$0xf]
    %v313 = vld [vmem:[#allocation7 + $0x28] sm:$0xf]
    %v314 = vld [vmem:[#allocation7 + $0x2c] sm:$0xf]
    %v315 = vld [vmem:[#allocation7 + $0x30] sm:$0xf]
    %v316 = vld [vmem:[#allocation7 + $0x34] sm:$0xf]
    %v317 = vld [vmem:[#allocation7 + $0x38] sm:$0xf]
    %v318 = vld [vmem:[#allocation7 + $0x3c] sm:$0xf]
    %v319 = vlaneseq
    %v320 = vshrl.u32 %v319, 7
    %v321 = vsub.s32 4, %v320
    %v322 = vrot.slane %v74, %v321
    %v339 = vunpack.c.l.b16 %v303
    %v340 = vunpack.c.l.b16 %v304
    %v341 = vunpack.c.l.b16 %v305
    %v342 = vunpack.c.l.b16 %v306
    %v343 = vunpack.c.l.b16 %v307
    %v344 = vunpack.c.l.b16 %v308
    %v345 = vunpack.c.l.b16 %v309
    %v346 = vunpack.c.l.b16 %v310
    %v347 = vunpack.c.l.b16 %v311
    %v348 = vunpack.c.l.b16 %v312
    %v349 = vunpack.c.l.b16 %v313
    %v350 = vunpack.c.l.b16 %v314
    %v351 = vunpack.c.l.b16 %v315
    %v352 = vunpack.c.l.b16 %v316
    %v353 = vunpack.c.l.b16 %v317
    %v354 = vunpack.c.l.b16 %v318
    %v355 = vpack.c.b16 %v340, %v339
    %v356 = vpack.c.b16 %v342, %v341
    %v357 = vpack.c.b16 %v344, %v343
    %v358 = vpack.c.b16 %v346, %v345
    %v359 = vpack.c.b16 %v348, %v347
    %v360 = vpack.c.b16 %v350, %v349
    %v361 = vpack.c.b16 %v352, %v351
    %v362 = vpack.c.b16 %v354, %v353
    %371 = vmatprep.subr.bf16.mxu0 0
    %372 = vmatpush1.bf16.msra.mxu0 %v355
    %373 = vmatprep.subr.bf16.mxu0 0
    %374 = vmatpush1.bf16.msra.mxu0 %v356
    %375 = vmatprep.subr.bf16.mxu0 0
    %376 = vmatpush1.bf16.msra.mxu0 %v357
    %377 = vmatprep.subr.bf16.mxu0 0
    %378 = vmatpush1.bf16.msra.mxu0 %v358
    %379 = vmatprep.subr.bf16.mxu0 0
    %380 = vmatpush1.bf16.msra.mxu0 %v359
    %381 = vmatprep.subr.bf16.mxu0 0
    %382 = vmatpush1.bf16.msra.mxu0 %v360
    %383 = vmatprep.subr.bf16.mxu0 0
    %384 = vmatpush1.bf16.msra.mxu0 %v361
    %385 = vmatprep.subr.bf16.mxu0 0
    %386 = vmatpush1.bf16.msra.mxu0 %v362
    %387 = vmatprep.subr.bf16.mxu0 0
    %388 = vmatpush1.bf16.msra.mxu0 0
    %389 = vmatprep.subr.bf16.mxu0 0
    %390 = vmatpush1.bf16.msra.mxu0 0
    %391 = vmatprep.subr.bf16.mxu0 0
    %392 = vmatpush1.bf16.msra.mxu0 0
    %393 = vmatprep.subr.bf16.mxu0 0
    %394 = vmatpush1.bf16.msra.mxu0 0
    %395 = vmatprep.subr.bf16.mxu0 0
    %396 = vmatpush1.bf16.msra.mxu0 0
    %397 = vmatprep.subr.bf16.mxu0 0
    %398 = vmatpush1.bf16.msra.mxu0 0
    %399 = vmatprep.subr.bf16.mxu0 0
    %400 = vmatpush1.bf16.msra.mxu0 0
    %401 = vmatprep.subr.bf16.mxu0 0
    %402 = vmatpush1.bf16.msra.mxu0 0
    %403 = vmatprep.mubr.bf16.mxu0 0
    %404 = vmatmul.mubr.bf16.gmra.mrb[0].mxu0 %v302
    %v405 = vpop.f32.mrb[0].mxu0
    %v406 = vadd.f32 %v322, %v405
    %v407 = vpop.f32.mrb[0].mxu0
    %v408 = vpop.f32.mrb[0].mxu0
    %v409 = vpop.f32.mrb[0].mxu0
    %410 = vdwg.mxu0
    %vm411 = vcmask 31744
    %412 = vst.msk [vmem:[%s5] sm:$0xff] %vm411, %v406
    // Predicated region
    $region38: #{tpu_custom_call.1} parent=1 // pred_check
      _
    $region39: #{tpu_custom_call.1} parent=1 // pred_check_branch
      %414 = sbr.rel (0) target = $region41
    $region40: #{tpu_custom_call.1} parent=1 // pred_region
      _
    $region41: #{tpu_custom_call.1} parent=1 // pred_fallthru
      _
    // Predicated region
    $region42: #{tpu_custom_call.1} parent=1 // pred_check
      _
    $region43: #{tpu_custom_call.1} parent=1 // pred_check_branch
      %416 = sbr.rel (0) target = $region45
    $region44: #{tpu_custom_call.1} parent=1 // pred_region
      _
    $region45: #{tpu_custom_call.1} parent=1 // pred_fallthru
      _
    %417 = vsyncpa [#allocation3], 1
    %418 = vsyncpa [#allocation5], 1
    %419 = vsyncpa [#allocation8], 1

</llo_original>
